<compile_context>
chip_gen: v5e
topology: v5e:2x2
jax: 0.10.0
libtpu: 0.0.40
codegen_flags: <defaults>
</compile_context>

<pallas_src>
import jax
import jax.numpy as jnp
from jax.experimental import pallas as pl
from jax.experimental.pallas import tpu as pltpu


LANE = 128     # TPU lane width (last-dim alignment target)
SUBLANE = 16   # safe sublane multiple for both f32 (8) and bf16 (16) tiles

# Keep the double-buffered working set comfortably under v5e's 16 MiB default
# scoped VMEM (also far under v6e 32 MiB / v7x 32 MiB-scoped-of-64-MiB).
_VMEM_BUDGET_BYTES = 12 << 20


def _round_up(x, m):
    return ((x + m - 1) // m) * m


# ---------------------------------------------------------------------------
# Kernel
# ---------------------------------------------------------------------------
def mlp2_kernel(x_ref, w1_ref, b1_ref, w2_ref, b2_ref, o_ref):
    # Layer 1: MXU matmul with f32 accumulation; bias + ReLU in f32 on the VPU.
    h = jnp.dot(x_ref[...], w1_ref[...], preferred_element_type=jnp.float32)
    h = jnp.maximum(h + b1_ref[...], 0.0)              # b1 is (1, H), broadcasts
    # Layer 2: cast activations back to the matmul dtype for the MXU.
    out = jnp.dot(h.astype(w2_ref.dtype), w2_ref[...],
                  preferred_element_type=jnp.float32)
    o_ref[...] = (out + b2_ref[...]).astype(o_ref.dtype)


# ---------------------------------------------------------------------------
# Parameter preparation (pad + cast once, reuse across calls)
# ---------------------------------------------------------------------------
def prepare_params(w1, b1, w2, b2, *, matmul_dtype=jnp.bfloat16):
    """Pad D_in / D_out to 128 lanes, keep hidden dim un-padded, cast weights.

    Zero-padding is exact: padded input columns multiply zero weights, padded
    output columns are sliced off in the wrapper.
    Weight layout is (in_features, out_features): kernel computes x @ W + b.
    """
    D_in, H = w1.shape
    D_out = w2.shape[1]
    D_in_p = _round_up(D_in, LANE)
    D_out_p = _round_up(D_out, LANE)

    w1_p = jnp.pad(w1.astype(matmul_dtype), ((0, D_in_p - D_in), (0, 0)))
    b1_p = b1.astype(jnp.float32).reshape(1, H)
    w2_p = jnp.pad(w2.astype(matmul_dtype), ((0, 0), (0, D_out_p - D_out)))
    b2_p = jnp.pad(b2.astype(jnp.float32), (0, D_out_p - D_out)).reshape(1, D_out_p)

    return dict(w1=w1_p, b1=b1_p, w2=w2_p, b2=b2_p,
                d_in=D_in, h=H, d_out=D_out)


# ---------------------------------------------------------------------------
# Tile-size selection
# ---------------------------------------------------------------------------
def _vmem_bytes(tm, d_in_p, h, d_out_p, mm_bytes, out_bytes):
    x_buf = tm * d_in_p * mm_bytes * 2          # double-buffered input tile
    o_buf = tm * d_out_p * out_bytes * 2        # double-buffered output tile
    w_res = (d_in_p * h + h * d_out_p) * mm_bytes + (h + d_out_p) * 4
    return x_buf + o_buf + w_res


def _choose_tm(B, d_in_p, h, d_out_p, block_b, mm_bytes, out_bytes):
    # Round the requested tile to a SUBLANE multiple (bf16 needs 16-row tiles).
    tm = _round_up(min(block_b, B), SUBLANE)
    # Shrink until the double-buffered working set fits the VMEM budget.
    while tm > SUBLANE and _vmem_bytes(tm, d_in_p, h, d_out_p,
                                       mm_bytes, out_bytes) > _VMEM_BUDGET_BYTES:
        tm = max(SUBLANE, _round_up(tm // 2, SUBLANE))
    # Avoid a mostly-empty last tile (padded-tail DMA/MXU waste): shrink while
    # the overhang exceeds half a tile and shrinking actually reduces padding.
    while tm > 4 * SUBLANE and (_round_up(B, tm) - B) > tm // 2:
        new_tm = _round_up(tm // 2, SUBLANE)
        if _round_up(B, new_tm) >= _round_up(B, tm):
            break
        tm = new_tm
    return tm


# ---------------------------------------------------------------------------
# Forward
# ---------------------------------------------------------------------------
def mlp2_forward_prepared(x_nchw, params, *, block_b=1024,
                          out_dtype=jnp.float32):
    """Forward with already-prepared (padded / cast) parameters.

    x_nchw: (B, ...) f32; flattened to (B, input_dim). Returns (B, output_dim)
    in out_dtype.
    """
    w1_p, b1_p, w2_p, b2_p = params["w1"], params["b1"], params["w2"], params["b2"]
    D_in, H, D_out = params["d_in"], params["h"], params["d_out"]
    D_in_p, D_out_p = w1_p.shape[0], w2_p.shape[1]
    mm_dtype = w1_p.dtype
    mm_bytes = jnp.dtype(mm_dtype).itemsize
    out_bytes = jnp.dtype(out_dtype).itemsize

    B = x_nchw.shape[0]
    x = x_nchw.reshape(B, -1)                       # nn.Flatten()
    assert x.shape[1] == D_in, "input feature dim does not match weights"

    TM = _choose_tm(B, D_in_p, H, D_out_p, block_b, mm_bytes, out_bytes)
    B_p = _round_up(B, TM)

    # Single fused cast(+pad) pass over x; no padding at all when the shapes
    # are already lane/tile aligned.
    x = x.astype(mm_dtype)
    if B_p != B or D_in_p != D_in:
        x = jnp.pad(x, ((0, B_p - B), (0, D_in_p - D_in)))

    grid = (B_p // TM,)

    cost = pl.CostEstimate(
        flops=2 * B_p * D_in_p * H + 2 * B_p * H * D_out_p,
        transcendentals=0,
        bytes_accessed=(B_p * D_in_p * mm_bytes                  # x stream
                        + (D_in_p * H + H * D_out_p) * mm_bytes  # weights
                        + (H + D_out_p) * 4                      # biases
                        + B_p * D_out_p * out_bytes),            # out stream
    )

    out_p = pl.pallas_call(
        mlp2_kernel,
        out_shape=jax.ShapeDtypeStruct((B_p, D_out_p), out_dtype),
        grid=grid,
        in_specs=[
            # x: streamed per batch tile (auto double-buffered pipeline).
            pl.BlockSpec((TM, D_in_p), lambda i: (i, 0)),
            # Weights / biases: same block every grid step -> VMEM-resident,
            # no re-DMA across batch tiles. Hidden dim left at 32 (full-array
            # block dim), output dim padded to 128 for lane-dense stores.
            pl.BlockSpec((D_in_p, H), lambda i: (0, 0)),
            pl.BlockSpec((1, H), lambda i: (0, 0)),
            pl.BlockSpec((H, D_out_p), lambda i: (0, 0)),
            pl.BlockSpec((1, D_out_p), lambda i: (0, 0)),
        ],
        out_specs=pl.BlockSpec((TM, D_out_p), lambda i: (i, 0)),
        compiler_params=pltpu.CompilerParams(
            # Batch tiles are independent -> allow megacore sharding.
            dimension_semantics=("parallel",),
        ),
        cost_estimate=cost,
    )(x, w1_p, b1_p, w2_p, b2_p)

    return out_p[:B, :D_out]


def make_mlp2_forward(w1, b1, w2, b2, *, matmul_dtype=jnp.bfloat16,
                      block_b=1024, out_dtype=jnp.float32):
    """Pad/cast parameters once and return a jitted forward over x only."""
    params = prepare_params(w1, b1, w2, b2, matmul_dtype=matmul_dtype)

    @jax.jit
    def fwd(x_nchw):
        return mlp2_forward_prepared(x_nchw, params, block_b=block_b,
                                     out_dtype=out_dtype)

    return fwd


def mlp2_forward(x_nchw, w1, b1, w2, b2, *, matmul_dtype=jnp.bfloat16,
                 block_b=1024, out_dtype=jnp.float32):
    """One-shot convenience path (re-prepares params each call)."""
    params = prepare_params(w1, b1, w2, b2, matmul_dtype=matmul_dtype)
    return mlp2_forward_prepared(x_nchw, params, block_b=block_b,
                                 out_dtype=out_dtype)


# ---------------------------------------------------------------------------
# Parameter init (PyTorch-style)
# ---------------------------------------------------------------------------
def init_params(key, input_dim, hidden_dim, output_dim):
    """PyTorch-style uniform(-1/sqrt(fan_in), 1/sqrt(fan_in)) init."""
    k1, k2, k3, k4 = jax.random.split(key, 4)
    lim1 = 1.0 / jnp.sqrt(jnp.float32(input_dim))
    lim2 = 1.0 / jnp.sqrt(jnp.float32(hidden_dim))
    w1 = jax.random.uniform(k1, (input_dim, hidden_dim), jnp.float32, -lim1, lim1)
    b1 = jax.random.uniform(k2, (hidden_dim,), jnp.float32, -lim1, lim1)
    w2 = jax.random.uniform(k3, (hidden_dim, output_dim), jnp.float32, -lim2, lim2)
    b2 = jax.random.uniform(k4, (output_dim,), jnp.float32, -lim2, lim2)
    return w1, b1, w2, b2


if __name__ == "__main__":
    key = jax.random.PRNGKey(0)
    kx, kp = jax.random.split(key)

    # Small NCHW input consistent with the module (flattened by nn.Flatten).
    B, C, Hs, Ws = 2, 4, 16, 16
    input_dim = C * Hs * Ws        # 1024 (already a multiple of 128 -> no pad)
    hidden_dim = 32
    output_dim = 10

    x = jax.random.normal(kx, (B, C, Hs, Ws), dtype=jnp.float32)
    w1, b1, w2, b2 = init_params(kp, input_dim, hidden_dim, output_dim)

    # Pure-JAX f32 reference.
    x_flat = x.reshape(B, -1)
    ref = jnp.maximum(x_flat @ w1 + b1, 0.0) @ w2 + b2

    # 1) f32 matmul path: tight correctness check.
    out_f32 = mlp2_forward(x, w1, b1, w2, b2, matmul_dtype=jnp.float32)
    out_f32 = jax.block_until_ready(out_f32)
    assert out_f32.shape == (B, output_dim)
    assert jnp.allclose(out_f32, ref, atol=1e-4, rtol=1e-4)

    # 2) Deployment path: cached padded bf16 weights inside a jitted closure.
    fwd = make_mlp2_forward(w1, b1, w2, b2)          # prepare/cast once
    out_bf16 = jax.block_until_ready(fwd(x))
    assert out_bf16.shape == (B, output_dim)
    assert out_bf16.dtype == jnp.float32
    assert jnp.allclose(out_bf16, ref, atol=2e-2, rtol=2e-2)

    # 3) Optional bf16-output variant (halves writeback bytes; looser accuracy).
    fwd_bf16_out = make_mlp2_forward(w1, b1, w2, b2, out_dtype=jnp.bfloat16)
    out_bf16_out = jax.block_until_ready(fwd_bf16_out(x)).astype(jnp.float32)
    assert jnp.allclose(out_bf16_out, ref, atol=5e-2, rtol=5e-2)

    print("KERNEL_OK")
</pallas_src>

<mosaic_0001>
module attributes {stable_mosaic.version = 11 : i64} {
  func.func @mlp2_kernel(%arg0: i32, %arg1: memref<16x1024xf32, #tpu.memory_space<vmem>>, %arg2: memref<1024x32xf32, #tpu.memory_space<vmem>>, %arg3: memref<1x32xf32, #tpu.memory_space<vmem>>, %arg4: memref<32x128xf32, #tpu.memory_space<vmem>>, %arg5: memref<1x128xf32, #tpu.memory_space<vmem>>, %arg6: memref<16x128xf32, #tpu.memory_space<vmem>>) attributes {dimension_semantics = [#tpu.dimension_semantics<parallel>], iteration_bounds = array<i64: 1>, scalar_prefetch = 0 : i64, scratch_operands = 0 : i64, tpu.core_type = #tpu.core_type<tc>, window_params = [{transform_indices = @transform_0, window_bounds = array<i64: 16, 1024>}, {pipeline_mode = #tpu.pipeline_mode<synchronous>, transform_indices = @transform_1, window_bounds = array<i64: 1024, 32>}, {pipeline_mode = #tpu.pipeline_mode<synchronous>, transform_indices = @transform_2, window_bounds = array<i64: 1, 32>}, {pipeline_mode = #tpu.pipeline_mode<synchronous>, transform_indices = @transform_3, window_bounds = array<i64: 32, 128>}, {pipeline_mode = #tpu.pipeline_mode<synchronous>, transform_indices = @transform_4, window_bounds = array<i64: 1, 128>}, {transform_indices = @transform_5, window_bounds = array<i64: 16, 128>}]} {
    %c0 = arith.constant 0 : index
    %c0_0 = arith.constant 0 : index
    %0 = vector.load %arg1[%c0, %c0_0] : memref<16x1024xf32, #tpu.memory_space<vmem>>, vector<16x1024xf32>
    %c0_1 = arith.constant 0 : index
    %c0_2 = arith.constant 0 : index
    %1 = vector.load %arg2[%c0_1, %c0_2] : memref<1024x32xf32, #tpu.memory_space<vmem>>, vector<1024x32xf32>
    %cst = arith.constant dense<0.000000e+00> : vector<16x32xf32>
    %2 = tpu.matmul %0, %1, %cst {dimension_numbers = #tpu.dot_dimension_numbers<[1], [0], [0], [1], [0, 0, 1, 1], [], []>} : vector<16x1024xf32>, vector<1024x32xf32>, vector<16x32xf32> -> vector<16x32xf32>
    %c0_3 = arith.constant 0 : index
    %c0_4 = arith.constant 0 : index
    %3 = vector.load %arg3[%c0_3, %c0_4] : memref<1x32xf32, #tpu.memory_space<vmem>>, vector<1x32xf32>
    %4 = vector.broadcast %3 : vector<1x32xf32> to vector<16x32xf32>
    %5 = arith.addf %2, %4 : vector<16x32xf32>
    %cst_5 = arith.constant 0.000000e+00 : f32
    %6 = vector.broadcast %cst_5 : f32 to vector<16x32xf32>
    %7 = arith.maximumf %5, %6 : vector<16x32xf32>
    %c0_6 = arith.constant 0 : index
    %c0_7 = arith.constant 0 : index
    %8 = vector.load %arg4[%c0_6, %c0_7] : memref<32x128xf32, #tpu.memory_space<vmem>>, vector<32x128xf32>
    %cst_8 = arith.constant dense<0.000000e+00> : vector<16x128xf32>
    %9 = tpu.matmul %7, %8, %cst_8 {dimension_numbers = #tpu.dot_dimension_numbers<[1], [0], [0], [1], [0, 0, 1, 1], [], []>} : vector<16x32xf32>, vector<32x128xf32>, vector<16x128xf32> -> vector<16x128xf32>
    %c0_9 = arith.constant 0 : index
    %c0_10 = arith.constant 0 : index
    %10 = vector.load %arg5[%c0_9, %c0_10] : memref<1x128xf32, #tpu.memory_space<vmem>>, vector<1x128xf32>
    %11 = vector.broadcast %10 : vector<1x128xf32> to vector<16x128xf32>
    %12 = arith.addf %9, %11 : vector<16x128xf32>
    %c0_11 = arith.constant 0 : index
    %c0_12 = arith.constant 0 : index
    %13 = vector.load %arg6[%c0_11, %c0_12] : memref<16x128xf32, #tpu.memory_space<vmem>>, vector<16x128xf32>
    tpu.vector_store %arg6[%c0_11, %c0_12], %12 {strides = array<i32>} : memref<16x128xf32, #tpu.memory_space<vmem>>, vector<16x128xf32>,
    return
  }
  func.func @transform_0(%arg0: i32) -> (i32, i32) {
    %c0_i32 = arith.constant 0 : i32
    %c0_i32_0 = arith.constant 0 : i32
    return %arg0, %c0_i32 : i32, i32
  }
  func.func @transform_1(%arg0: i32) -> (i32, i32) {
    %c0_i32 = arith.constant 0 : i32
    %c0_i32_0 = arith.constant 0 : i32
    %c0_i32_1 = arith.constant 0 : i32
    return %c0_i32, %c0_i32_0 : i32, i32
  }
  func.func @transform_2(%arg0: i32) -> (i32, i32) {
    %c0_i32 = arith.constant 0 : i32
    %c0_i32_0 = arith.constant 0 : i32
    %c0_i32_1 = arith.constant 0 : i32
    return %c0_i32, %c0_i32_0 : i32, i32
  }
  func.func @transform_3(%arg0: i32) -> (i32, i32) {
    %c0_i32 = arith.constant 0 : i32
    %c0_i32_0 = arith.constant 0 : i32
    %c0_i32_1 = arith.constant 0 : i32
    return %c0_i32, %c0_i32_0 : i32, i32
  }
  func.func @transform_4(%arg0: i32) -> (i32, i32) {
    %c0_i32 = arith.constant 0 : i32
    %c0_i32_0 = arith.constant 0 : i32
    %c0_i32_1 = arith.constant 0 : i32
    return %c0_i32, %c0_i32_0 : i32, i32
  }
  func.func @transform_5(%arg0: i32) -> (i32, i32) {
    %c0_i32 = arith.constant 0 : i32
    %c0_i32_0 = arith.constant 0 : i32
    return %arg0, %c0_i32 : i32, i32
  }
}

</mosaic_0001>

<llo_original>
// kernel: tpu_custom_call.1
$region0: #{tpu_custom_call.1}
  #allocation0 [shape = 'u32[]', space=smem, size = 0x4, offset = 0x4, fixed_abs, tag = 'smem constant byte address 0x4 - core index']
  #allocation1 [shape = 'u32[72,128]{1,0:T(1,128)}', space=vmem, size = 0x9000, scoped, tag = 'internal scratch']
  %s0 = inlined_call_operand.vmem [shape: f32[16,1024], index: 0, kind: input, shape index: {}]
  %s1 = inlined_call_operand.vmem [shape: f32[1024,32], index: 1, kind: input, shape index: {}]
  %s2 = inlined_call_operand.vmem [shape: f32[1,32], index: 2, kind: input, shape index: {}]
  %s3 = inlined_call_operand.vmem [shape: f32[32,128], index: 3, kind: input, shape index: {}]
  %s4 = inlined_call_operand.vmem [shape: f32[1,128], index: 4, kind: input, shape index: {}]
  %s5 = inlined_call_operand.hbm [shape: f32[16,128], index: 5, kind: output, shape index: {}]
  %s6 = sld [smem:[#allocation0]]
  $region30: #{tpu_custom_call.1} parent=0
    _
  %s8 = ssub.s32 1, %s6
  %s9 = scalar_select 0, %s8, %s6
  $region1: #{tpu_custom_call.1} parent=0
    #allocation2 [shape = 'u8[8192]{0}', space=vmem, size = 0x2000, scoped, tag = 'output window, operand 0, single buffered']
    #allocation3 [shape = 's32[1]{0}', space=sflag, size = 0x4, scoped, tag = 'scoped memory for tpu_custom_call.1']
    %10 = vsyncpa [#allocation3], 0
    // Predicated region
    $region2: #{tpu_custom_call.1} parent=1 // pred_check
      _
    $region3: #{tpu_custom_call.1} parent=1 // pred_check_branch
      %12 = sbr.rel (0) target = $region5
    $region4: #{tpu_custom_call.1} parent=1 // pred_region
      _
    $region5: #{tpu_custom_call.1} parent=1 // pred_fallthru
      _
    // Predicated region
    $region6: #{tpu_custom_call.1} parent=1 // pred_check
      _
    $region7: #{tpu_custom_call.1} parent=1 // pred_check_branch
      %14 = sbr.rel (0) target = $region9
    $region8: #{tpu_custom_call.1} parent=1 // pred_region
      _
    $region9: #{tpu_custom_call.1} parent=1 // pred_fallthru
      _
    // Predicated region
    $region10: #{tpu_custom_call.1} parent=1 // pred_check
      _
    $region11: #{tpu_custom_call.1} parent=1 // pred_check_branch
      %16 = sbr.rel (0) target = $region13
    $region12: #{tpu_custom_call.1} parent=1 // pred_region
      _
    $region13: #{tpu_custom_call.1} parent=1 // pred_fallthru
      _
    // Predicated region
    $region14: #{tpu_custom_call.1} parent=1 // pred_check
      _
    $region15: #{tpu_custom_call.1} parent=1 // pred_check_branch
      %18 = sbr.rel (0) target = $region17
    $region16: #{tpu_custom_call.1} parent=1 // pred_region
      _
    $region17: #{tpu_custom_call.1} parent=1 // pred_fallthru
      _
    // Predicated region
    $region18: #{tpu_custom_call.1} parent=1 // pred_check
      _
    $region19: #{tpu_custom_call.1} parent=1 // pred_check_branch
      %20 = sbr.rel (0) target = $region21
    $region20: #{tpu_custom_call.1} parent=1 // pred_region
      _
    $region21: #{tpu_custom_call.1} parent=1 // pred_fallthru
      _
    %v21 = vld [vmem:[%s0] sm:$0xff]
    %v22 = vld [vmem:[%s0 + $0x8] sm:$0xff]
    %v23 = vld [vmem:[%s0 + $0x10] sm:$0xff]
    %v24 = vld [vmem:[%s0 + $0x18] sm:$0xff]
    %v25 = vld [vmem:[%s0 + $0x20] sm:$0xff]
    %v26 = vld [vmem:[%s0 + $0x28] sm:$0xff]
    %v27 = vld [vmem:[%s0 + $0x30] sm:$0xff]
    %v28 = vld [vmem:[%s0 + $0x38] sm:$0xff]
    %v29 = vld [vmem:[%s0 + $0x40] sm:$0xff]
    %v30 = vld [vmem:[%s0 + $0x48] sm:$0xff]
    %v31 = vld [vmem:[%s0 + $0x50] sm:$0xff]
    %v32 = vld [vmem:[%s0 + $0x58] sm:$0xff]
    %v33 = vld [vmem:[%s0 + $0x60] sm:$0xff]
    %v34 = vld [vmem:[%s0 + $0x68] sm:$0xff]
    %v35 = vld [vmem:[%s0 + $0x70] sm:$0xff]
    %v36 = vld [vmem:[%s0 + $0x78] sm:$0xff]
    %v37 = vld [vmem:[%s1] sm:$0xff]
    %v38 = vld [vmem:[%s1 + $0x8] sm:$0xff]
    %v39 = vld [vmem:[%s1 + $0x10] sm:$0xff]
    %v40 = vld [vmem:[%s1 + $0x18] sm:$0xff]
    %v41 = vld [vmem:[%s1 + $0x20] sm:$0xff]
    %v42 = vld [vmem:[%s1 + $0x28] sm:$0xff]
    %v43 = vld [vmem:[%s1 + $0x30] sm:$0xff]
    %v44 = vld [vmem:[%s1 + $0x38] sm:$0xff]
    %v45 = vld [vmem:[%s1 + $0x40] sm:$0xff]
    %v46 = vld [vmem:[%s1 + $0x48] sm:$0xff]
    %v47 = vld [vmem:[%s1 + $0x50] sm:$0xff]
    %v48 = vld [vmem:[%s1 + $0x58] sm:$0xff]
    %v49 = vld [vmem:[%s1 + $0x60] sm:$0xff]
    %v50 = vld [vmem:[%s1 + $0x68] sm:$0xff]
    %v51 = vld [vmem:[%s1 + $0x70] sm:$0xff]
    %v52 = vld [vmem:[%s1 + $0x78] sm:$0xff]
    %v53 = vld [vmem:[%s1 + $0x80] sm:$0xff]
    %v54 = vld [vmem:[%s1 + $0x88] sm:$0xff]
    %v55 = vld [vmem:[%s1 + $0x90] sm:$0xff]
    %v56 = vld [vmem:[%s1 + $0x98] sm:$0xff]
    %v57 = vld [vmem:[%s1 + $0xa0] sm:$0xff]
    %v58 = vld [vmem:[%s1 + $0xa8] sm:$0xff]
    %v59 = vld [vmem:[%s1 + $0xb0] sm:$0xff]
    %v60 = vld [vmem:[%s1 + $0xb8] sm:$0xff]
    %v61 = vld [vmem:[%s1 + $0xc0] sm:$0xff]
    %v62 = vld [vmem:[%s1 + $0xc8] sm:$0xff]
    %v63 = vld [vmem:[%s1 + $0xd0] sm:$0xff]
    %v64 = vld [vmem:[%s1 + $0xd8] sm:$0xff]
    %v65 = vld [vmem:[%s1 + $0xe0] sm:$0xff]
    %v66 = vld [vmem:[%s1 + $0xe8] sm:$0xff]
    %v67 = vld [vmem:[%s1 + $0xf0] sm:$0xff]
    %v68 = vld [vmem:[%s1 + $0xf8] sm:$0xff]
    %v69 = vld [vmem:[%s1 + $0x100] sm:$0xff]
    %v70 = vld [vmem:[%s1 + $0x108] sm:$0xff]
    %v71 = vld [vmem:[%s1 + $0x110] sm:$0xff]
    %v72 = vld [vmem:[%s1 + $0x118] sm:$0xff]
    %v73 = vld [vmem:[%s1 + $0x120] sm:$0xff]
    %v74 = vld [vmem:[%s1 + $0x128] sm:$0xff]
    %v75 = vld [vmem:[%s1 + $0x130] sm:$0xff]
    %v76 = vld [vmem:[%s1 + $0x138] sm:$0xff]
    %v77 = vld [vmem:[%s1 + $0x140] sm:$0xff]
    %v78 = vld [vmem:[%s1 + $0x148] sm:$0xff]
    %v79 = vld [vmem:[%s1 + $0x150] sm:$0xff]
    %v80 = vld [vmem:[%s1 + $0x158] sm:$0xff]
    %v81 = vld [vmem:[%s1 + $0x160] sm:$0xff]
    %v82 = vld [vmem:[%s1 + $0x168] sm:$0xff]
    %v83 = vld [vmem:[%s1 + $0x170] sm:$0xff]
    %v84 = vld [vmem:[%s1 + $0x178] sm:$0xff]
    %v85 = vld [vmem:[%s1 + $0x180] sm:$0xff]
    %v86 = vld [vmem:[%s1 + $0x188] sm:$0xff]
    %v87 = vld [vmem:[%s1 + $0x190] sm:$0xff]
    %v88 = vld [vmem:[%s1 + $0x198] sm:$0xff]
    %v89 = vld [vmem:[%s1 + $0x1a0] sm:$0xff]
    %v90 = vld [vmem:[%s1 + $0x1a8] sm:$0xff]
    %v91 = vld [vmem:[%s1 + $0x1b0] sm:$0xff]
    %v92 = vld [vmem:[%s1 + $0x1b8] sm:$0xff]
    %v93 = vld [vmem:[%s1 + $0x1c0] sm:$0xff]
    %v94 = vld [vmem:[%s1 + $0x1c8] sm:$0xff]
    %v95 = vld [vmem:[%s1 + $0x1d0] sm:$0xff]
    %v96 = vld [vmem:[%s1 + $0x1d8] sm:$0xff]
    %v97 = vld [vmem:[%s1 + $0x1e0] sm:$0xff]
    %v98 = vld [vmem:[%s1 + $0x1e8] sm:$0xff]
    %v99 = vld [vmem:[%s1 + $0x1f0] sm:$0xff]
    %v100 = vld [vmem:[%s1 + $0x1f8] sm:$0xff]
    %v101 = vld [vmem:[%s1 + $0x200] sm:$0xff]
    %v102 = vld [vmem:[%s1 + $0x208] sm:$0xff]
    %v103 = vld [vmem:[%s1 + $0x210] sm:$0xff]
    %v104 = vld [vmem:[%s1 + $0x218] sm:$0xff]
    %v105 = vld [vmem:[%s1 + $0x220] sm:$0xff]
    %v106 = vld [vmem:[%s1 + $0x228] sm:$0xff]
    %v107 = vld [vmem:[%s1 + $0x230] sm:$0xff]
    %v108 = vld [vmem:[%s1 + $0x238] sm:$0xff]
    %v109 = vld [vmem:[%s1 + $0x240] sm:$0xff]
    %v110 = vld [vmem:[%s1 + $0x248] sm:$0xff]
    %v111 = vld [vmem:[%s1 + $0x250] sm:$0xff]
    %v112 = vld [vmem:[%s1 + $0x258] sm:$0xff]
    %v113 = vld [vmem:[%s1 + $0x260] sm:$0xff]
    %v114 = vld [vmem:[%s1 + $0x268] sm:$0xff]
    %v115 = vld [vmem:[%s1 + $0x270] sm:$0xff]
    %v116 = vld [vmem:[%s1 + $0x278] sm:$0xff]
    %v117 = vld [vmem:[%s1 + $0x280] sm:$0xff]
    %v118 = vld [vmem:[%s1 + $0x288] sm:$0xff]
    %v119 = vld [vmem:[%s1 + $0x290] sm:$0xff]
    %v120 = vld [vmem:[%s1 + $0x298] sm:$0xff]
    %v121 = vld [vmem:[%s1 + $0x2a0] sm:$0xff]
    %v122 = vld [vmem:[%s1 + $0x2a8] sm:$0xff]
    %v123 = vld [vmem:[%s1 + $0x2b0] sm:$0xff]
    %v124 = vld [vmem:[%s1 + $0x2b8] sm:$0xff]
    %v125 = vld [vmem:[%s1 + $0x2c0] sm:$0xff]
    %v126 = vld [vmem:[%s1 + $0x2c8] sm:$0xff]
    %v127 = vld [vmem:[%s1 + $0x2d0] sm:$0xff]
    %v128 = vld [vmem:[%s1 + $0x2d8] sm:$0xff]
    %v129 = vld [vmem:[%s1 + $0x2e0] sm:$0xff]
    %v130 = vld [vmem:[%s1 + $0x2e8] sm:$0xff]
    %v131 = vld [vmem:[%s1 + $0x2f0] sm:$0xff]
    %v132 = vld [vmem:[%s1 + $0x2f8] sm:$0xff]
    %v133 = vld [vmem:[%s1 + $0x300] sm:$0xff]
    %v134 = vld [vmem:[%s1 + $0x308] sm:$0xff]
    %v135 = vld [vmem:[%s1 + $0x310] sm:$0xff]
    %v136 = vld [vmem:[%s1 + $0x318] sm:$0xff]
    %v137 = vld [vmem:[%s1 + $0x320] sm:$0xff]
    %v138 = vld [vmem:[%s1 + $0x328] sm:$0xff]
    %v139 = vld [vmem:[%s1 + $0x330] sm:$0xff]
    %v140 = vld [vmem:[%s1 + $0x338] sm:$0xff]
    %v141 = vld [vmem:[%s1 + $0x340] sm:$0xff]
    %v142 = vld [vmem:[%s1 + $0x348] sm:$0xff]
    %v143 = vld [vmem:[%s1 + $0x350] sm:$0xff]
    %v144 = vld [vmem:[%s1 + $0x358] sm:$0xff]
    %v145 = vld [vmem:[%s1 + $0x360] sm:$0xff]
    %v146 = vld [vmem:[%s1 + $0x368] sm:$0xff]
    %v147 = vld [vmem:[%s1 + $0x370] sm:$0xff]
    %v148 = vld [vmem:[%s1 + $0x378] sm:$0xff]
    %v149 = vld [vmem:[%s1 + $0x380] sm:$0xff]
    %v150 = vld [vmem:[%s1 + $0x388] sm:$0xff]
    %v151 = vld [vmem:[%s1 + $0x390] sm:$0xff]
    %v152 = vld [vmem:[%s1 + $0x398] sm:$0xff]
    %v153 = vld [vmem:[%s1 + $0x3a0] sm:$0xff]
    %v154 = vld [vmem:[%s1 + $0x3a8] sm:$0xff]
    %v155 = vld [vmem:[%s1 + $0x3b0] sm:$0xff]
    %v156 = vld [vmem:[%s1 + $0x3b8] sm:$0xff]
    %v157 = vld [vmem:[%s1 + $0x3c0] sm:$0xff]
    %v158 = vld [vmem:[%s1 + $0x3c8] sm:$0xff]
    %v159 = vld [vmem:[%s1 + $0x3d0] sm:$0xff]
    %v160 = vld [vmem:[%s1 + $0x3d8] sm:$0xff]
    %v161 = vld [vmem:[%s1 + $0x3e0] sm:$0xff]
    %v162 = vld [vmem:[%s1 + $0x3e8] sm:$0xff]
    %v163 = vld [vmem:[%s1 + $0x3f0] sm:$0xff]
    %v164 = vld [vmem:[%s1 + $0x3f8] sm:$0xff]
    %v165 = vld [vmem:[%s2] sm:$0x1]
    %v167 = vperm.slane %v165, 0
    %169 = vmatpush.msra.mxu0 %v52
    %170 = vmatpush.msra.mxu0 %v51
    %171 = vmatpush.msra.mxu0 %v50
    %172 = vmatpush.msra.mxu0 %v49
    %173 = vmatpush.msra.mxu0 %v48
    %174 = vmatpush.msra.mxu0 %v47
    %175 = vmatpush.msra.mxu0 %v46
    %176 = vmatpush.msra.mxu0 %v45
    %177 = vmatpush.msra.mxu0 %v44
    %178 = vmatpush.msra.mxu0 %v43
    %179 = vmatpush.msra.mxu0 %v42
    %180 = vmatpush.msra.mxu0 %v41
    %181 = vmatpush.msra.mxu0 %v40
    %182 = vmatpush.msra.mxu0 %v39
    %183 = vmatpush.msra.mxu0 %v38
    %184 = vmatpush.msra.mxu0 %v37
    %185 = vmatmul.f32.gmra.mxu0 %v21
    %v186 = vpop.f32.mrf.mxu0
    %v187 = vadd.f32 %v167, %v186
    %188 = vmatmul.f32.gmra.mxu0 %v29
    %v189 = vpop.f32.mrf.mxu0
    %v190 = vadd.f32 %v167, %v189
    %191 = vdwg.mxu0
    %192 = vmatpush.msra.mxu0 %v68
    %193 = vmatpush.msra.mxu0 %v67
    %194 = vmatpush.msra.mxu0 %v66
    %195 = vmatpush.msra.mxu0 %v65
    %196 = vmatpush.msra.mxu0 %v64
    %197 = vmatpush.msra.mxu0 %v63
    %198 = vmatpush.msra.mxu0 %v62
    %199 = vmatpush.msra.mxu0 %v61
    %200 = vmatpush.msra.mxu0 %v60
    %201 = vmatpush.msra.mxu0 %v59
    %202 = vmatpush.msra.mxu0 %v58
    %203 = vmatpush.msra.mxu0 %v57
    %204 = vmatpush.msra.mxu0 %v56
    %205 = vmatpush.msra.mxu0 %v55
    %206 = vmatpush.msra.mxu0 %v54
    %207 = vmatpush.msra.mxu0 %v53
    %208 = vmatmul.f32.gmra.mxu0 %v22
    %v209 = vpop.f32.mrf.mxu0
    %v210 = vadd.f32 %v187, %v209
    %211 = vmatmul.f32.gmra.mxu0 %v30
    %v212 = vpop.f32.mrf.mxu0
    %v213 = vadd.f32 %v190, %v212
    %214 = vdwg.mxu0
    %215 = vmatpush.msra.mxu0 %v84
    %216 = vmatpush.msra.mxu0 %v83
    %217 = vmatpush.msra.mxu0 %v82
    %218 = vmatpush.msra.mxu0 %v81
    %219 = vmatpush.msra.mxu0 %v80
    %220 = vmatpush.msra.mxu0 %v79
    %221 = vmatpush.msra.mxu0 %v78
    %222 = vmatpush.msra.mxu0 %v77
    %223 = vmatpush.msra.mxu0 %v76
    %224 = vmatpush.msra.mxu0 %v75
    %225 = vmatpush.msra.mxu0 %v74
    %226 = vmatpush.msra.mxu0 %v73
    %227 = vmatpush.msra.mxu0 %v72
    %228 = vmatpush.msra.mxu0 %v71
    %229 = vmatpush.msra.mxu0 %v70
    %230 = vmatpush.msra.mxu0 %v69
    %231 = vmatmul.f32.gmra.mxu0 %v23
    %v232 = vpop.f32.mrf.mxu0
    %v233 = vadd.f32 %v210, %v232
    %234 = vmatmul.f32.gmra.mxu0 %v31
    %v235 = vpop.f32.mrf.mxu0
    %v236 = vadd.f32 %v213, %v235
    %237 = vdwg.mxu0
    %238 = vmatpush.msra.mxu0 %v100
    %239 = vmatpush.msra.mxu0 %v99
    %240 = vmatpush.msra.mxu0 %v98
    %241 = vmatpush.msra.mxu0 %v97
    %242 = vmatpush.msra.mxu0 %v96
    %243 = vmatpush.msra.mxu0 %v95
    %244 = vmatpush.msra.mxu0 %v94
    %245 = vmatpush.msra.mxu0 %v93
    %246 = vmatpush.msra.mxu0 %v92
    %247 = vmatpush.msra.mxu0 %v91
    %248 = vmatpush.msra.mxu0 %v90
    %249 = vmatpush.msra.mxu0 %v89
    %250 = vmatpush.msra.mxu0 %v88
    %251 = vmatpush.msra.mxu0 %v87
    %252 = vmatpush.msra.mxu0 %v86
    %253 = vmatpush.msra.mxu0 %v85
    %254 = vmatmul.f32.gmra.mxu0 %v24
    %v255 = vpop.f32.mrf.mxu0
    %v256 = vadd.f32 %v233, %v255
    %257 = vmatmul.f32.gmra.mxu0 %v32
    %v258 = vpop.f32.mrf.mxu0
    %v259 = vadd.f32 %v236, %v258
    %260 = vdwg.mxu0
    %261 = vmatpush.msra.mxu0 %v116
    %262 = vmatpush.msra.mxu0 %v115
    %263 = vmatpush.msra.mxu0 %v114
    %264 = vmatpush.msra.mxu0 %v113
    %265 = vmatpush.msra.mxu0 %v112
    %266 = vmatpush.msra.mxu0 %v111
    %267 = vmatpush.msra.mxu0 %v110
    %268 = vmatpush.msra.mxu0 %v109
    %269 = vmatpush.msra.mxu0 %v108
    %270 = vmatpush.msra.mxu0 %v107
    %271 = vmatpush.msra.mxu0 %v106
    %272 = vmatpush.msra.mxu0 %v105
    %273 = vmatpush.msra.mxu0 %v104
    %274 = vmatpush.msra.mxu0 %v103
    %275 = vmatpush.msra.mxu0 %v102
    %276 = vmatpush.msra.mxu0 %v101
    %277 = vmatmul.f32.gmra.mxu0 %v25
    %v278 = vpop.f32.mrf.mxu0
    %v279 = vadd.f32 %v256, %v278
    %280 = vmatmul.f32.gmra.mxu0 %v33
    %v281 = vpop.f32.mrf.mxu0
    %v282 = vadd.f32 %v259, %v281
    %283 = vdwg.mxu0
    %284 = vmatpush.msra.mxu0 %v132
    %285 = vmatpush.msra.mxu0 %v131
    %286 = vmatpush.msra.mxu0 %v130
    %287 = vmatpush.msra.mxu0 %v129
    %288 = vmatpush.msra.mxu0 %v128
    %289 = vmatpush.msra.mxu0 %v127
    %290 = vmatpush.msra.mxu0 %v126
    %291 = vmatpush.msra.mxu0 %v125
    %292 = vmatpush.msra.mxu0 %v124
    %293 = vmatpush.msra.mxu0 %v123
    %294 = vmatpush.msra.mxu0 %v122
    %295 = vmatpush.msra.mxu0 %v121
    %296 = vmatpush.msra.mxu0 %v120
    %297 = vmatpush.msra.mxu0 %v119
    %298 = vmatpush.msra.mxu0 %v118
    %299 = vmatpush.msra.mxu0 %v117
    %300 = vmatmul.f32.gmra.mxu0 %v26
    %v301 = vpop.f32.mrf.mxu0
    %v302 = vadd.f32 %v279, %v301
    %303 = vmatmul.f32.gmra.mxu0 %v34
    %v304 = vpop.f32.mrf.mxu0
    %v305 = vadd.f32 %v282, %v304
    %306 = vdwg.mxu0
    %307 = vmatpush.msra.mxu0 %v148
    %308 = vmatpush.msra.mxu0 %v147
    %309 = vmatpush.msra.mxu0 %v146
    %310 = vmatpush.msra.mxu0 %v145
    %311 = vmatpush.msra.mxu0 %v144
    %312 = vmatpush.msra.mxu0 %v143
    %313 = vmatpush.msra.mxu0 %v142
    %314 = vmatpush.msra.mxu0 %v141
    %315 = vmatpush.msra.mxu0 %v140
    %316 = vmatpush.msra.mxu0 %v139
    %317 = vmatpush.msra.mxu0 %v138
    %318 = vmatpush.msra.mxu0 %v137
    %319 = vmatpush.msra.mxu0 %v136
    %320 = vmatpush.msra.mxu0 %v135
    %321 = vmatpush.msra.mxu0 %v134
    %322 = vmatpush.msra.mxu0 %v133
    %323 = vmatmul.f32.gmra.mxu0 %v27
    %v324 = vpop.f32.mrf.mxu0
    %v325 = vadd.f32 %v302, %v324
    %326 = vmatmul.f32.gmra.mxu0 %v35
    %v327 = vpop.f32.mrf.mxu0
    %v328 = vadd.f32 %v305, %v327
    %329 = vdwg.mxu0
    %330 = vmatpush.msra.mxu0 %v164
    %331 = vmatpush.msra.mxu0 %v163
    %332 = vmatpush.msra.mxu0 %v162
    %333 = vmatpush.msra.mxu0 %v161
    %334 = vmatpush.msra.mxu0 %v160
    %335 = vmatpush.msra.mxu0 %v159
    %336 = vmatpush.msra.mxu0 %v158
    %337 = vmatpush.msra.mxu0 %v157
    %338 = vmatpush.msra.mxu0 %v156
    %339 = vmatpush.msra.mxu0 %v155
    %340 = vmatpush.msra.mxu0 %v154
    %341 = vmatpush.msra.mxu0 %v153
    %342 = vmatpush.msra.mxu0 %v152
    %343 = vmatpush.msra.mxu0 %v151
    %344 = vmatpush.msra.mxu0 %v150
    %345 = vmatpush.msra.mxu0 %v149
    %346 = vmatmul.f32.gmra.mxu0 %v28
    %v347 = vpop.f32.mrf.mxu0
    %v348 = vadd.f32 %v325, %v347
    %349 = vmatmul.f32.gmra.mxu0 %v36
    %v350 = vpop.f32.mrf.mxu0
    %v351 = vadd.f32 %v328, %v350
    %352 = vdwg.mxu0
    %v353 = vmax.f32 %v348, 0.0
    %v354 = vmax.f32 %v351, 0.0
    %v355 = vld [vmem:[%s3] sm:$0xff]
    %v356 = vld [vmem:[%s3 + $0x8] sm:$0xff]
    %v357 = vld [vmem:[%s3 + $0x10] sm:$0xff]
    %v358 = vld [vmem:[%s3 + $0x18] sm:$0xff]
    %v359 = vld [vmem:[%s4] sm:$0x1]
    %v361 = vperm.slane %v359, 0
    %vm363 = vcmask 261120
    %v365 = vsel %vm363, %v353, 0
    %v368 = vsel %vm363, %v354, 0
    %370 = vmatpush.msra.mxu0 0.0
    %371 = vmatpush.msra.mxu0 0.0
    %372 = vmatpush.msra.mxu0 0.0
    %373 = vmatpush.msra.mxu0 0.0
    %374 = vmatpush.msra.mxu0 0.0
    %375 = vmatpush.msra.mxu0 0.0
    %376 = vmatpush.msra.mxu0 0.0
    %377 = vmatpush.msra.mxu0 0.0
    %378 = vmatpush.msra.mxu0 0.0
    %379 = vmatpush.msra.mxu0 0.0
    %380 = vmatpush.msra.mxu0 0.0
    %381 = vmatpush.msra.mxu0 0.0
    %382 = vmatpush.msra.mxu0 %v358
    %383 = vmatpush.msra.mxu0 %v357
    %384 = vmatpush.msra.mxu0 %v356
    %385 = vmatpush.msra.mxu0 %v355
    %386 = vmatmul.f32.gmra.mxu0 %v365
    %v387 = vpop.f32.mrf.mxu0
    %v388 = vadd.f32 %v361, %v387
    %389 = vmatmul.f32.gmra.mxu0 %v368
    %v390 = vpop.f32.mrf.mxu0
    %v391 = vadd.f32 %v361, %v390
    %392 = vdwg.mxu0
    %393 = vst [vmem:[#allocation2] sm:$0xff] %v388
    %394 = vst [vmem:[#allocation2 + $0x8] sm:$0xff] %v391
    // Predicated region
    $region22: #{tpu_custom_call.1} parent=1 // pred_check
      _
    $region23: #{tpu_custom_call.1} parent=1 // pred_check_branch
      %396 = sbr.rel (0) target = $region25
    $region24: #{tpu_custom_call.1} parent=1 // pred_region
      %398 = vsyncadd [#allocation3], 0
      %s399 = sshll.u32 [#allocation2], 4
      %s400 = int_to_ptr.vmem [resolvable:$true] %s399
      %s401 = sshll.u32 %s5, 4
      %s402 = int_to_ptr.hbm [resolvable:$true] %s401
      %407 = dma.vmem_to_hbm [thread:$0]  %s400, 256, %s402, [#allocation3], 128, 128, 8
    $region25: #{tpu_custom_call.1} parent=1 // pred_fallthru
      _
    // Predicated region
    $region26: #{tpu_custom_call.1} parent=1 // pred_check
      _
    $region27: #{tpu_custom_call.1} parent=1 // pred_check_branch
      %409 = sbr.rel (0) target = $region29
    $region28: #{tpu_custom_call.1} parent=1 // pred_region
      %411 = dma.done [#allocation3], 256
    $region29: #{tpu_custom_call.1} parent=1 // pred_fallthru
      _
    %412 = vsyncpa [#allocation3], 1

</llo_original>
